<compile_context>
chip_gen: v7x
topology: tpu7x:2x2x1
jax: 0.10.0
libtpu: 0.0.40
codegen_flags: <defaults>
</compile_context>

<pallas_src>
import jax
import jax.numpy as jnp
from jax.experimental import pallas as pl
from jax.experimental.pallas import tpu as pltpu

# ----------------------------- model dims -----------------------------------
B = 2
LIDAR_LEN = 64          # lidar beams (torch NCW: (B, 1, 64))
LIDAR_H = 64
LIDAR_FEAT = 32
VEL_DIM = 2
VEL_FEAT = 16
TGT_DIM = 2
TGT_FEAT = 16
OBS_DIM = 64            # fused observation feature
PATH_LEN = 8
PATH_DIM = 2
PATH_FLAT = PATH_LEN * PATH_DIM      # 16
ENC_H = 64
LATENT = 16
DEC_H = 64
FUSE_IN = LIDAR_FEAT + VEL_FEAT + TGT_FEAT   # 64

F32 = jnp.float32
BF16 = jnp.bfloat16      # MXU operand dtype; accumulation stays f32
W = 128                  # lane width of every packed operand / weight

# lane layout of the packed INPUT slab (per batch row)
L_LIDAR = 0              # [0:64)   lidar
L_PATH = 64              # [64:80)  gt path      (aligned with encoder K lanes)
L_EPS = 80               # [80:96)  reparam eps  (aligned with logvar lanes)
L_VEL = 96               # [96:98)  vel
L_TGT = 98               # [98:100) target; [100:128) zero pad

# lane layout of the packed OUTPUT slab
O_OBS = 0                # [0:64)   observation
O_MU = 64                # [64:80)  mu
O_LV = 80                # [80:96)  logvar
O_PRED = 96              # [96:112) predicted path (8x2 flattened); rest 0


# ------------------------------ fused kernel ---------------------------------
def hnav_kernel(x_ref,
                w1_ref, b1_ref, w2_ref, b2_ref, w3_ref, b3_ref,
                w4_ref, b4_ref, w5_ref, b5_ref, w6_ref, b6_ref,
                w7_ref, b7_ref,
                out_ref):
    x = x_ref[...]                                           # (bb, 128) f32
    bb = x.shape[0]
    lane = jax.lax.broadcasted_iota(jnp.int32, (bb, W), 1)
    m_path = (lane >= L_PATH) & (lane < L_PATH + PATH_FLAT)
    m_mu = (lane >= O_MU) & (lane < O_MU + LATENT)
    m_lv = (lane >= O_LV) & (lane < O_LV + LATENT)

    def mm(a_bf16, w_ref):
        return jnp.dot(a_bf16, w_ref[...], preferred_element_type=F32)

    relu = lambda t: jnp.maximum(t, 0.0)

    # ---- perception: two block-diagonal layers + fusion (all 128x128) ----
    h1 = relu(mm(x.astype(BF16), w1_ref) + b1_ref[...])       # hl1|hv|ht
    h2 = relu(mm(h1.astype(BF16), w2_ref) + b2_ref[...])      # hl2|hv|ht (feat)
    obs = relu(mm(h2.astype(BF16), w3_ref) + b3_ref[...])     # obs @ lanes [0:64)
    obs_bf = obs.astype(BF16)                                  # hoisted, used twice

    # ---- CVAE encoder: enc_in = obs ++ path (path dropped on lanes [64:80)) ----
    enc_in = obs_bf + jnp.where(m_path, x, 0.0).astype(BF16)
    he = relu(mm(enc_in, w4_ref) + b4_ref[...])                # he @ [0:64)
    head = mm(he.astype(BF16), w5_ref) + b5_ref[...]           # mu@[64:80), logvar@[80:96)

    # ---- reparameterize + decoder (z never materialized; wd_z duplicated on
    #      both the mu lanes and the sigma*eps lanes of the decoder weight) ----
    sig_eps = jnp.exp(0.5 * head) * x                          # eps lanes line up with logvar
    dec_in = (obs_bf
              + jnp.where(m_mu, head, 0.0).astype(BF16)
              + jnp.where(m_lv, sig_eps, 0.0).astype(BF16))
    hd = relu(mm(dec_in, w6_ref) + b6_ref[...])                # hd @ [0:64)
    pred = mm(hd.astype(BF16), w7_ref) + b7_ref[...]           # pred @ [96:112)

    # addition-based output pack: obs|mu|logvar|pred occupy disjoint lanes
    out_ref[...] = obs + head + pred


# ------------------------------ wrapper ---------------------------------------
def _round_up(n, m):
    return ((n + m - 1) // m) * m


def _pick_block(b8):
    """b8 is already a multiple of 8. One grid step for small batches; at least
    two 'parallel' steps for bigger batches so v7x's second TensorCore gets
    work (a second step costs ~0.35us on single-TC v5e/v6e - negligible)."""
    if b8 <= 32:
        return b8
    return min(_round_up(-(-b8 // 2), 8), 1024)


def hnav_fused_call(slab_in, Ws, bs):
    b = slab_in.shape[0]
    b8 = _round_up(b, 8)
    bb = _pick_block(b8)
    b_pad = _round_up(b8, bb)
    if b_pad != b:
        # zero pad rows: stay finite through exp(), discarded by the caller
        slab_in = jnp.pad(slab_in, ((0, b_pad - b), (0, 0)))
    grid = (b_pad // bb,)

    row = pl.BlockSpec((bb, W), lambda i: (i, 0))
    wspec = pl.BlockSpec((W, W), lambda i: (0, 0))
    bspec = pl.BlockSpec((1, W), lambda i: (0, 0))

    args = [slab_in]
    in_specs = [row]
    for w_i, b_i in zip(Ws, bs):
        args += [w_i, b_i]
        in_specs += [wspec, bspec]

    flops = 2 * b_pad * len(Ws) * W * W
    bytes_accessed = int(slab_in.size * 4 + b_pad * W * 4
                         + sum(a.size * a.dtype.itemsize for a in args[1:]))

    return pl.pallas_call(
        hnav_kernel,
        out_shape=jax.ShapeDtypeStruct((b_pad, W), F32),
        grid_spec=pltpu.PrefetchScalarGridSpec(
            num_scalar_prefetch=0,
            grid=grid,
            in_specs=in_specs,
            out_specs=pl.BlockSpec((bb, W), lambda i: (i, 0))),
        compiler_params=pltpu.CompilerParams(
            dimension_semantics=("parallel",)),
        cost_estimate=pl.CostEstimate(flops=flops,
                                      transcendentals=b_pad * W,
                                      bytes_accessed=bytes_accessed),
    )(*args)


def hnav_forward(input_dict, params, eps):
    """Mirrors HNav.forward(input_dict, sample=False) with the CVAE generator."""
    output = {
        "path": input_dict["path"],
        "heuristic": input_dict["heuristic"],
        "local_map": input_dict["local_map"],
    }
    b = input_dict["lidar"].shape[0]
    lidar_flat = input_dict["lidar"].reshape(b, -1)   # (B, 1, L) -> (B, L)
    path_flat = input_dict["path"].reshape(b, -1)     # (B, T, 2) -> (B, 16)

    # host-side pack: one lane-dense (B, 128) input slab
    pad_lanes = W - (LIDAR_LEN + PATH_FLAT + LATENT + VEL_DIM + TGT_DIM)
    slab_in = jnp.concatenate(
        [lidar_flat, path_flat, eps, input_dict["vel"], input_dict["target"],
         jnp.zeros((b, pad_lanes), F32)], axis=-1)

    # NOTE: the original module prints observation.shape here; dropped (trace noise).
    slab_out = hnav_fused_call(slab_in, params["W"], params["b"])

    mu = slab_out[:b, O_MU:O_MU + LATENT]
    logvar = slab_out[:b, O_LV:O_LV + LATENT]
    pred = slab_out[:b, O_PRED:O_PRED + PATH_FLAT]
    # TODO(synk): traversable_step is forwarded untouched; its masking role in the
    # original CVAE loss has no inference-path compute to reproduce here.
    output.update({
        "predicted_path": pred.reshape(b, PATH_LEN, PATH_DIM),
        "mu": mu,
        "logvar": logvar,
        "traversable_step": input_dict["traversable_step"],
    })
    return output


# --------------------------- deterministic params -----------------------------
def init_params(key):
    def rnd(k, shape, scale=0.1):
        return scale * jax.random.normal(k, shape, dtype=F32)

    ks = jax.random.split(key, 24)
    raw = {
        "wl1": rnd(ks[0], (LIDAR_LEN, LIDAR_H)),
        "wl2": rnd(ks[1], (LIDAR_H, LIDAR_FEAT)),
        "wv": rnd(ks[2], (VEL_DIM, VEL_FEAT)),
        "wt": rnd(ks[3], (TGT_DIM, TGT_FEAT)),
        "wf": rnd(ks[4], (FUSE_IN, OBS_DIM)),
        "we_o": rnd(ks[5], (OBS_DIM, ENC_H)),
        "we_p": rnd(ks[6], (PATH_FLAT, ENC_H)),
        "wmu": rnd(ks[7], (ENC_H, LATENT)),
        "wlv": rnd(ks[8], (ENC_H, LATENT)),
        "wd_z": rnd(ks[9], (LATENT, DEC_H)),
        "wd_o": rnd(ks[10], (OBS_DIM, DEC_H)),
        "wd2": rnd(ks[11], (DEC_H, PATH_FLAT)),
        "bl1": rnd(ks[12], (LIDAR_H,), 0.05),
        "bl2": rnd(ks[13], (LIDAR_FEAT,), 0.05),
        "bv": rnd(ks[14], (VEL_FEAT,), 0.05),
        "bt": rnd(ks[15], (TGT_FEAT,), 0.05),
        "bf": rnd(ks[16], (OBS_DIM,), 0.05),
        "be1": rnd(ks[17], (ENC_H,), 0.05),
        "bmu": rnd(ks[18], (LATENT,), 0.05),
        "blv": rnd(ks[19], (LATENT,), 0.05),
        "bd1": rnd(ks[20], (DEC_H,), 0.05),
        "bd2": rnd(ks[21], (PATH_FLAT,), 0.05),
    }
    # bf16-round weights once so kernel and reference share identical values
    for k in list(raw):
        if k.startswith("w"):
            raw[k] = raw[k].astype(BF16).astype(F32)
    packed = pack_params(raw)
    return {"raw": raw, "W": packed["W"], "b": packed["b"]}


def pack_params(p):
    """Pack per-layer weights/biases into seven lane-aligned (128,128)/(1,128) operands."""
    zw = lambda: jnp.zeros((W, W), F32)
    zb = lambda: jnp.zeros((1, W), F32)
    eye16 = jnp.eye(16, dtype=F32)

    # layer 1: block-diagonal lidar / vel / target
    w1 = zw().at[L_LIDAR:L_LIDAR + LIDAR_LEN, 0:LIDAR_H].set(p["wl1"])
    w1 = w1.at[L_VEL:L_VEL + VEL_DIM, 64:64 + VEL_FEAT].set(p["wv"])
    w1 = w1.at[L_TGT:L_TGT + TGT_DIM, 80:80 + TGT_FEAT].set(p["wt"])
    b1 = zb().at[0, 0:LIDAR_H].set(p["bl1"])
    b1 = b1.at[0, 64:64 + VEL_FEAT].set(p["bv"])
    b1 = b1.at[0, 80:80 + TGT_FEAT].set(p["bt"])

    # layer 2: lidar layer-2 + identity pass-through for hv/ht -> feat at [0:64)
    w2 = zw().at[0:LIDAR_H, 0:LIDAR_FEAT].set(p["wl2"])
    w2 = w2.at[64:80, 32:48].set(eye16)
    w2 = w2.at[80:96, 48:64].set(eye16)
    b2 = zb().at[0, 0:LIDAR_FEAT].set(p["bl2"])

    # layer 3: fusion -> obs at [0:64)
    w3 = zw().at[0:FUSE_IN, 0:OBS_DIM].set(p["wf"])
    b3 = zb().at[0, 0:OBS_DIM].set(p["bf"])

    # encoder: K-padded (obs rows [0:64), path rows [64:80)) -> he at [0:64)
    w4 = zw().at[0:OBS_DIM, 0:ENC_H].set(p["we_o"])
    w4 = w4.at[L_PATH:L_PATH + PATH_FLAT, 0:ENC_H].set(p["we_p"])
    b4 = zb().at[0, 0:ENC_H].set(p["be1"])

    # head: mu -> lanes [64:80), logvar -> lanes [80:96)
    w5 = zw().at[0:ENC_H, O_MU:O_MU + LATENT].set(p["wmu"])
    w5 = w5.at[0:ENC_H, O_LV:O_LV + LATENT].set(p["wlv"])
    b5 = zb().at[0, O_MU:O_MU + LATENT].set(p["bmu"])
    b5 = b5.at[0, O_LV:O_LV + LATENT].set(p["blv"])

    # decoder hidden: obs rows [0:64); wd_z duplicated on mu lanes AND sigma*eps lanes
    w6 = zw().at[0:OBS_DIM, 0:DEC_H].set(p["wd_o"])
    w6 = w6.at[O_MU:O_MU + LATENT, 0:DEC_H].set(p["wd_z"])
    w6 = w6.at[O_LV:O_LV + LATENT, 0:DEC_H].set(p["wd_z"])
    b6 = zb().at[0, 0:DEC_H].set(p["bd1"])

    # decoder out: pred -> lanes [96:112)
    w7 = zw().at[0:DEC_H, O_PRED:O_PRED + PATH_FLAT].set(p["wd2"])
    b7 = zb().at[0, O_PRED:O_PRED + PATH_FLAT].set(p["bd2"])

    Ws = [w.astype(BF16) for w in (w1, w2, w3, w4, w5, w6, w7)]
    bs = [b1, b2, b3, b4, b5, b6, b7]
    return {"W": Ws, "b": bs}


# --------------------------- pure-JAX reference --------------------------------
def hnav_ref(input_dict, raw, eps):
    relu = lambda x: jnp.maximum(x, 0.0)
    b = input_dict["lidar"].shape[0]
    lidar = input_dict["lidar"].reshape(b, -1)
    hl = relu(lidar @ raw["wl1"] + raw["bl1"])
    hl = relu(hl @ raw["wl2"] + raw["bl2"])
    hv = relu(input_dict["vel"] @ raw["wv"] + raw["bv"])
    ht = relu(input_dict["target"] @ raw["wt"] + raw["bt"])
    obs = relu(jnp.concatenate([hl, hv, ht], axis=-1) @ raw["wf"] + raw["bf"])
    path_flat = input_dict["path"].reshape(b, -1)
    he = relu(obs @ raw["we_o"] + path_flat @ raw["we_p"] + raw["be1"])
    mu = he @ raw["wmu"] + raw["bmu"]
    logvar = he @ raw["wlv"] + raw["blv"]
    z = mu + jnp.exp(0.5 * logvar) * eps
    hd = relu(z @ raw["wd_z"] + obs @ raw["wd_o"] + raw["bd1"])
    pred = hd @ raw["wd2"] + raw["bd2"]
    return pred.reshape(b, PATH_LEN, PATH_DIM), mu, logvar


if __name__ == "__main__":
    key = jax.random.PRNGKey(0)
    k_in, k_par, k_eps = jax.random.split(key, 3)
    kk = jax.random.split(k_in, 6)

    input_dict = {
        "lidar": jax.random.normal(kk[0], (B, 1, LIDAR_LEN), dtype=F32),   # NCW
        "vel": jax.random.normal(kk[1], (B, VEL_DIM), dtype=F32),
        "target": jax.random.normal(kk[2], (B, TGT_DIM), dtype=F32),
        "path": jax.random.normal(kk[3], (B, PATH_LEN, PATH_DIM), dtype=F32),
        "heuristic": jax.random.normal(kk[4], (B, PATH_LEN), dtype=F32),
        "local_map": jax.random.normal(kk[5], (B, 1, 16, 16), dtype=F32),  # NCHW
        "traversable_step": jnp.ones((B, PATH_LEN), dtype=jnp.int32),
    }
    params = init_params(k_par)
    eps = jax.random.normal(k_eps, (B, LATENT), dtype=F32)  # reparam noise

    fwd = jax.jit(hnav_forward)
    out = fwd(input_dict, params, eps)
    jax.block_until_ready(out)

    assert out["predicted_path"].shape == (B, PATH_LEN, PATH_DIM)
    assert out["mu"].shape == (B, LATENT)
    assert out["logvar"].shape == (B, LATENT)

    # numerical check vs pure-JAX reference (same bf16-rounded weights; tolerance
    # covers bf16 activation rounding inside the kernel's MXU matmuls)
    pred_r, mu_r, lv_r = hnav_ref(input_dict, params["raw"], eps)
    assert jnp.allclose(out["predicted_path"], pred_r, rtol=5e-2, atol=2e-2)
    assert jnp.allclose(out["mu"], mu_r, rtol=5e-2, atol=2e-2)
    assert jnp.allclose(out["logvar"], lv_r, rtol=5e-2, atol=2e-2)
    assert jnp.all(jnp.isfinite(out["predicted_path"]))

    print("KERNEL_OK")
</pallas_src>

<mosaic_0001>
module attributes {stable_mosaic.version = 11 : i64} {
  func.func @hnav_kernel(%arg0: i32, %arg1: memref<8x128xf32, #tpu.memory_space<vmem>>, %arg2: memref<128x128xbf16, #tpu.memory_space<vmem>>, %arg3: memref<1x128xf32, #tpu.memory_space<vmem>>, %arg4: memref<128x128xbf16, #tpu.memory_space<vmem>>, %arg5: memref<1x128xf32, #tpu.memory_space<vmem>>, %arg6: memref<128x128xbf16, #tpu.memory_space<vmem>>, %arg7: memref<1x128xf32, #tpu.memory_space<vmem>>, %arg8: memref<128x128xbf16, #tpu.memory_space<vmem>>, %arg9: memref<1x128xf32, #tpu.memory_space<vmem>>, %arg10: memref<128x128xbf16, #tpu.memory_space<vmem>>, %arg11: memref<1x128xf32, #tpu.memory_space<vmem>>, %arg12: memref<128x128xbf16, #tpu.memory_space<vmem>>, %arg13: memref<1x128xf32, #tpu.memory_space<vmem>>, %arg14: memref<128x128xbf16, #tpu.memory_space<vmem>>, %arg15: memref<1x128xf32, #tpu.memory_space<vmem>>, %arg16: memref<8x128xf32, #tpu.memory_space<vmem>>) attributes {dimension_semantics = [#tpu.dimension_semantics<parallel>], iteration_bounds = array<i64: 1>, scalar_prefetch = 0 : i64, scratch_operands = 0 : i64, tpu.core_type = #tpu.core_type<tc>, window_params = [{transform_indices = @transform_0, window_bounds = array<i64: 8, 128>}, {pipeline_mode = #tpu.pipeline_mode<synchronous>, transform_indices = @transform_1, window_bounds = array<i64: 128, 128>}, {pipeline_mode = #tpu.pipeline_mode<synchronous>, transform_indices = @transform_2, window_bounds = array<i64: 1, 128>}, {pipeline_mode = #tpu.pipeline_mode<synchronous>, transform_indices = @transform_3, window_bounds = array<i64: 128, 128>}, {pipeline_mode = #tpu.pipeline_mode<synchronous>, transform_indices = @transform_4, window_bounds = array<i64: 1, 128>}, {pipeline_mode = #tpu.pipeline_mode<synchronous>, transform_indices = @transform_5, window_bounds = array<i64: 128, 128>}, {pipeline_mode = #tpu.pipeline_mode<synchronous>, transform_indices = @transform_6, window_bounds = array<i64: 1, 128>}, {pipeline_mode = #tpu.pipeline_mode<synchronous>, transform_indices = @transform_7, window_bounds = array<i64: 128, 128>}, {pipeline_mode = #tpu.pipeline_mode<synchronous>, transform_indices = @transform_8, window_bounds = array<i64: 1, 128>}, {pipeline_mode = #tpu.pipeline_mode<synchronous>, transform_indices = @transform_9, window_bounds = array<i64: 128, 128>}, {pipeline_mode = #tpu.pipeline_mode<synchronous>, transform_indices = @transform_10, window_bounds = array<i64: 1, 128>}, {pipeline_mode = #tpu.pipeline_mode<synchronous>, transform_indices = @transform_11, window_bounds = array<i64: 128, 128>}, {pipeline_mode = #tpu.pipeline_mode<synchronous>, transform_indices = @transform_12, window_bounds = array<i64: 1, 128>}, {pipeline_mode = #tpu.pipeline_mode<synchronous>, transform_indices = @transform_13, window_bounds = array<i64: 128, 128>}, {pipeline_mode = #tpu.pipeline_mode<synchronous>, transform_indices = @transform_14, window_bounds = array<i64: 1, 128>}, {transform_indices = @transform_15, window_bounds = array<i64: 8, 128>}]} {
    %c0 = arith.constant 0 : index
    %c0_0 = arith.constant 0 : index
    %0 = vector.load %arg1[%c0, %c0_0] : memref<8x128xf32, #tpu.memory_space<vmem>>, vector<8x128xf32>
    %1 = tpu.iota {dimensions = array<i32: 1>} : vector<8x128xi32>
    %c64_i32 = arith.constant 64 : i32
    %2 = vector.broadcast %c64_i32 : i32 to vector<8x128xi32>
    %3 = arith.cmpi sge, %1, %2 : vector<8x128xi32>
    %c80_i32 = arith.constant 80 : i32
    %4 = vector.broadcast %c80_i32 : i32 to vector<8x128xi32>
    %5 = arith.cmpi slt, %1, %4 : vector<8x128xi32>
    %6 = arith.andi %3, %5 : vector<8x128xi1>
    %c64_i32_1 = arith.constant 64 : i32
    %7 = vector.broadcast %c64_i32_1 : i32 to vector<8x128xi32>
    %8 = arith.cmpi sge, %1, %7 : vector<8x128xi32>
    %c80_i32_2 = arith.constant 80 : i32
    %9 = vector.broadcast %c80_i32_2 : i32 to vector<8x128xi32>
    %10 = arith.cmpi slt, %1, %9 : vector<8x128xi32>
    %11 = arith.andi %8, %10 : vector<8x128xi1>
    %c80_i32_3 = arith.constant 80 : i32
    %12 = vector.broadcast %c80_i32_3 : i32 to vector<8x128xi32>
    %13 = arith.cmpi sge, %1, %12 : vector<8x128xi32>
    %c96_i32 = arith.constant 96 : i32
    %14 = vector.broadcast %c96_i32 : i32 to vector<8x128xi32>
    %15 = arith.cmpi slt, %1, %14 : vector<8x128xi32>
    %16 = arith.andi %13, %15 : vector<8x128xi1>
    %17 = arith.truncf %0 : vector<8x128xf32> to vector<8x128xbf16>
    %c0_4 = arith.constant 0 : index
    %c0_5 = arith.constant 0 : index
    %18 = vector.load %arg2[%c0_4, %c0_5] : memref<128x128xbf16, #tpu.memory_space<vmem>>, vector<128x128xbf16>
    %cst = arith.constant dense<0.000000e+00> : vector<8x128xf32>
    %19 = tpu.matmul %17, %18, %cst {dimension_numbers = #tpu.dot_dimension_numbers<[1], [0], [0], [1], [0, 0, 1, 1], [], []>} : vector<8x128xbf16>, vector<128x128xbf16>, vector<8x128xf32> -> vector<8x128xf32>
    %c0_6 = arith.constant 0 : index
    %c0_7 = arith.constant 0 : index
    %20 = vector.load %arg3[%c0_6, %c0_7] : memref<1x128xf32, #tpu.memory_space<vmem>>, vector<1x128xf32>
    %21 = vector.broadcast %20 : vector<1x128xf32> to vector<8x128xf32>
    %22 = arith.addf %19, %21 : vector<8x128xf32>
    %cst_8 = arith.constant 0.000000e+00 : f32
    %23 = vector.broadcast %cst_8 : f32 to vector<8x128xf32>
    %24 = arith.maximumf %22, %23 : vector<8x128xf32>
    %25 = arith.truncf %24 : vector<8x128xf32> to vector<8x128xbf16>
    %c0_9 = arith.constant 0 : index
    %c0_10 = arith.constant 0 : index
    %26 = vector.load %arg4[%c0_9, %c0_10] : memref<128x128xbf16, #tpu.memory_space<vmem>>, vector<128x128xbf16>
    %cst_11 = arith.constant dense<0.000000e+00> : vector<8x128xf32>
    %27 = tpu.matmul %25, %26, %cst_11 {dimension_numbers = #tpu.dot_dimension_numbers<[1], [0], [0], [1], [0, 0, 1, 1], [], []>} : vector<8x128xbf16>, vector<128x128xbf16>, vector<8x128xf32> -> vector<8x128xf32>
    %c0_12 = arith.constant 0 : index
    %c0_13 = arith.constant 0 : index
    %28 = vector.load %arg5[%c0_12, %c0_13] : memref<1x128xf32, #tpu.memory_space<vmem>>, vector<1x128xf32>
    %29 = vector.broadcast %28 : vector<1x128xf32> to vector<8x128xf32>
    %30 = arith.addf %27, %29 : vector<8x128xf32>
    %cst_14 = arith.constant 0.000000e+00 : f32
    %31 = vector.broadcast %cst_14 : f32 to vector<8x128xf32>
    %32 = arith.maximumf %30, %31 : vector<8x128xf32>
    %33 = arith.truncf %32 : vector<8x128xf32> to vector<8x128xbf16>
    %c0_15 = arith.constant 0 : index
    %c0_16 = arith.constant 0 : index
    %34 = vector.load %arg6[%c0_15, %c0_16] : memref<128x128xbf16, #tpu.memory_space<vmem>>, vector<128x128xbf16>
    %cst_17 = arith.constant dense<0.000000e+00> : vector<8x128xf32>
    %35 = tpu.matmul %33, %34, %cst_17 {dimension_numbers = #tpu.dot_dimension_numbers<[1], [0], [0], [1], [0, 0, 1, 1], [], []>} : vector<8x128xbf16>, vector<128x128xbf16>, vector<8x128xf32> -> vector<8x128xf32>
    %c0_18 = arith.constant 0 : index
    %c0_19 = arith.constant 0 : index
    %36 = vector.load %arg7[%c0_18, %c0_19] : memref<1x128xf32, #tpu.memory_space<vmem>>, vector<1x128xf32>
    %37 = vector.broadcast %36 : vector<1x128xf32> to vector<8x128xf32>
    %38 = arith.addf %35, %37 : vector<8x128xf32>
    %cst_20 = arith.constant 0.000000e+00 : f32
    %39 = vector.broadcast %cst_20 : f32 to vector<8x128xf32>
    %40 = arith.maximumf %38, %39 : vector<8x128xf32>
    %41 = arith.truncf %40 : vector<8x128xf32> to vector<8x128xbf16>
    %cst_21 = arith.constant 0.000000e+00 : f32
    %42 = vector.broadcast %cst_21 : f32 to vector<8x128xf32>
    %43 = arith.select %6, %0, %42 : vector<8x128xi1>, vector<8x128xf32>
    %44 = arith.truncf %43 : vector<8x128xf32> to vector<8x128xbf16>
    %45 = arith.addf %41, %44 : vector<8x128xbf16>
    %c0_22 = arith.constant 0 : index
    %c0_23 = arith.constant 0 : index
    %46 = vector.load %arg8[%c0_22, %c0_23] : memref<128x128xbf16, #tpu.memory_space<vmem>>, vector<128x128xbf16>
    %cst_24 = arith.constant dense<0.000000e+00> : vector<8x128xf32>
    %47 = tpu.matmul %45, %46, %cst_24 {dimension_numbers = #tpu.dot_dimension_numbers<[1], [0], [0], [1], [0, 0, 1, 1], [], []>} : vector<8x128xbf16>, vector<128x128xbf16>, vector<8x128xf32> -> vector<8x128xf32>
    %c0_25 = arith.constant 0 : index
    %c0_26 = arith.constant 0 : index
    %48 = vector.load %arg9[%c0_25, %c0_26] : memref<1x128xf32, #tpu.memory_space<vmem>>, vector<1x128xf32>
    %49 = vector.broadcast %48 : vector<1x128xf32> to vector<8x128xf32>
    %50 = arith.addf %47, %49 : vector<8x128xf32>
    %cst_27 = arith.constant 0.000000e+00 : f32
    %51 = vector.broadcast %cst_27 : f32 to vector<8x128xf32>
    %52 = arith.maximumf %50, %51 : vector<8x128xf32>
    %53 = arith.truncf %52 : vector<8x128xf32> to vector<8x128xbf16>
    %c0_28 = arith.constant 0 : index
    %c0_29 = arith.constant 0 : index
    %54 = vector.load %arg10[%c0_28, %c0_29] : memref<128x128xbf16, #tpu.memory_space<vmem>>, vector<128x128xbf16>
    %cst_30 = arith.constant dense<0.000000e+00> : vector<8x128xf32>
    %55 = tpu.matmul %53, %54, %cst_30 {dimension_numbers = #tpu.dot_dimension_numbers<[1], [0], [0], [1], [0, 0, 1, 1], [], []>} : vector<8x128xbf16>, vector<128x128xbf16>, vector<8x128xf32> -> vector<8x128xf32>
    %c0_31 = arith.constant 0 : index
    %c0_32 = arith.constant 0 : index
    %56 = vector.load %arg11[%c0_31, %c0_32] : memref<1x128xf32, #tpu.memory_space<vmem>>, vector<1x128xf32>
    %57 = vector.broadcast %56 : vector<1x128xf32> to vector<8x128xf32>
    %58 = arith.addf %55, %57 : vector<8x128xf32>
    %cst_33 = arith.constant 5.000000e-01 : f32
    %59 = vector.broadcast %cst_33 : f32 to vector<8x128xf32>
    %60 = arith.mulf %59, %58 : vector<8x128xf32>
    %61 = math.exp %60 : vector<8x128xf32>
    %62 = arith.mulf %61, %0 : vector<8x128xf32>
    %cst_34 = arith.constant 0.000000e+00 : f32
    %63 = vector.broadcast %cst_34 : f32 to vector<8x128xf32>
    %64 = arith.select %11, %58, %63 : vector<8x128xi1>, vector<8x128xf32>
    %65 = arith.truncf %64 : vector<8x128xf32> to vector<8x128xbf16>
    %66 = arith.addf %41, %65 : vector<8x128xbf16>
    %cst_35 = arith.constant 0.000000e+00 : f32
    %67 = vector.broadcast %cst_35 : f32 to vector<8x128xf32>
    %68 = arith.select %16, %62, %67 : vector<8x128xi1>, vector<8x128xf32>
    %69 = arith.truncf %68 : vector<8x128xf32> to vector<8x128xbf16>
    %70 = arith.addf %66, %69 : vector<8x128xbf16>
    %c0_36 = arith.constant 0 : index
    %c0_37 = arith.constant 0 : index
    %71 = vector.load %arg12[%c0_36, %c0_37] : memref<128x128xbf16, #tpu.memory_space<vmem>>, vector<128x128xbf16>
    %cst_38 = arith.constant dense<0.000000e+00> : vector<8x128xf32>
    %72 = tpu.matmul %70, %71, %cst_38 {dimension_numbers = #tpu.dot_dimension_numbers<[1], [0], [0], [1], [0, 0, 1, 1], [], []>} : vector<8x128xbf16>, vector<128x128xbf16>, vector<8x128xf32> -> vector<8x128xf32>
    %c0_39 = arith.constant 0 : index
    %c0_40 = arith.constant 0 : index
    %73 = vector.load %arg13[%c0_39, %c0_40] : memref<1x128xf32, #tpu.memory_space<vmem>>, vector<1x128xf32>
    %74 = vector.broadcast %73 : vector<1x128xf32> to vector<8x128xf32>
    %75 = arith.addf %72, %74 : vector<8x128xf32>
    %cst_41 = arith.constant 0.000000e+00 : f32
    %76 = vector.broadcast %cst_41 : f32 to vector<8x128xf32>
    %77 = arith.maximumf %75, %76 : vector<8x128xf32>
    %78 = arith.truncf %77 : vector<8x128xf32> to vector<8x128xbf16>
    %c0_42 = arith.constant 0 : index
    %c0_43 = arith.constant 0 : index
    %79 = vector.load %arg14[%c0_42, %c0_43] : memref<128x128xbf16, #tpu.memory_space<vmem>>, vector<128x128xbf16>
    %cst_44 = arith.constant dense<0.000000e+00> : vector<8x128xf32>
    %80 = tpu.matmul %78, %79, %cst_44 {dimension_numbers = #tpu.dot_dimension_numbers<[1], [0], [0], [1], [0, 0, 1, 1], [], []>} : vector<8x128xbf16>, vector<128x128xbf16>, vector<8x128xf32> -> vector<8x128xf32>
    %c0_45 = arith.constant 0 : index
    %c0_46 = arith.constant 0 : index
    %81 = vector.load %arg15[%c0_45, %c0_46] : memref<1x128xf32, #tpu.memory_space<vmem>>, vector<1x128xf32>
    %82 = vector.broadcast %81 : vector<1x128xf32> to vector<8x128xf32>
    %83 = arith.addf %80, %82 : vector<8x128xf32>
    %84 = arith.addf %40, %58 : vector<8x128xf32>
    %85 = arith.addf %84, %83 : vector<8x128xf32>
    %c0_47 = arith.constant 0 : index
    %c0_48 = arith.constant 0 : index
    %86 = vector.load %arg16[%c0_47, %c0_48] : memref<8x128xf32, #tpu.memory_space<vmem>>, vector<8x128xf32>
    tpu.vector_store %arg16[%c0_47, %c0_48], %85 {strides = array<i32>} : memref<8x128xf32, #tpu.memory_space<vmem>>, vector<8x128xf32>,
    return
  }
  func.func @transform_0(%arg0: i32) -> (i32, i32) {
    %c0_i32 = arith.constant 0 : i32
    %c0_i32_0 = arith.constant 0 : i32
    return %arg0, %c0_i32 : i32, i32
  }
  func.func @transform_1(%arg0: i32) -> (i32, i32) {
    %c0_i32 = arith.constant 0 : i32
    %c0_i32_0 = arith.constant 0 : i32
    %c0_i32_1 = arith.constant 0 : i32
    return %c0_i32, %c0_i32_0 : i32, i32
  }
  func.func @transform_2(%arg0: i32) -> (i32, i32) {
    %c0_i32 = arith.constant 0 : i32
    %c0_i32_0 = arith.constant 0 : i32
    %c0_i32_1 = arith.constant 0 : i32
    return %c0_i32, %c0_i32_0 : i32, i32
  }
  func.func @transform_3(%arg0: i32) -> (i32, i32) {
    %c0_i32 = arith.constant 0 : i32
    %c0_i32_0 = arith.constant 0 : i32
    %c0_i32_1 = arith.constant 0 : i32
    return %c0_i32, %c0_i32_0 : i32, i32
  }
  func.func @transform_4(%arg0: i32) -> (i32, i32) {
    %c0_i32 = arith.constant 0 : i32
    %c0_i32_0 = arith.constant 0 : i32
    %c0_i32_1 = arith.constant 0 : i32
    return %c0_i32, %c0_i32_0 : i32, i32
  }
  func.func @transform_5(%arg0: i32) -> (i32, i32) {
    %c0_i32 = arith.constant 0 : i32
    %c0_i32_0 = arith.constant 0 : i32
    %c0_i32_1 = arith.constant 0 : i32
    return %c0_i32, %c0_i32_0 : i32, i32
  }
  func.func @transform_6(%arg0: i32) -> (i32, i32) {
    %c0_i32 = arith.constant 0 : i32
    %c0_i32_0 = arith.constant 0 : i32
    %c0_i32_1 = arith.constant 0 : i32
    return %c0_i32, %c0_i32_0 : i32, i32
  }
  func.func @transform_7(%arg0: i32) -> (i32, i32) {
    %c0_i32 = arith.constant 0 : i32
    %c0_i32_0 = arith.constant 0 : i32
    %c0_i32_1 = arith.constant 0 : i32
    return %c0_i32, %c0_i32_0 : i32, i32
  }
  func.func @transform_8(%arg0: i32) -> (i32, i32) {
    %c0_i32 = arith.constant 0 : i32
    %c0_i32_0 = arith.constant 0 : i32
    %c0_i32_1 = arith.constant 0 : i32
    return %c0_i32, %c0_i32_0 : i32, i32
  }
  func.func @transform_9(%arg0: i32) -> (i32, i32) {
    %c0_i32 = arith.constant 0 : i32
    %c0_i32_0 = arith.constant 0 : i32
    %c0_i32_1 = arith.constant 0 : i32
    return %c0_i32, %c0_i32_0 : i32, i32
  }
  func.func @transform_10(%arg0: i32) -> (i32, i32) {
    %c0_i32 = arith.constant 0 : i32
    %c0_i32_0 = arith.constant 0 : i32
    %c0_i32_1 = arith.constant 0 : i32
    return %c0_i32, %c0_i32_0 : i32, i32
  }
  func.func @transform_11(%arg0: i32) -> (i32, i32) {
    %c0_i32 = arith.constant 0 : i32
    %c0_i32_0 = arith.constant 0 : i32
    %c0_i32_1 = arith.constant 0 : i32
    return %c0_i32, %c0_i32_0 : i32, i32
  }
  func.func @transform_12(%arg0: i32) -> (i32, i32) {
    %c0_i32 = arith.constant 0 : i32
    %c0_i32_0 = arith.constant 0 : i32
    %c0_i32_1 = arith.constant 0 : i32
    return %c0_i32, %c0_i32_0 : i32, i32
  }
  func.func @transform_13(%arg0: i32) -> (i32, i32) {
    %c0_i32 = arith.constant 0 : i32
    %c0_i32_0 = arith.constant 0 : i32
    %c0_i32_1 = arith.constant 0 : i32
    return %c0_i32, %c0_i32_0 : i32, i32
  }
  func.func @transform_14(%arg0: i32) -> (i32, i32) {
    %c0_i32 = arith.constant 0 : i32
    %c0_i32_0 = arith.constant 0 : i32
    %c0_i32_1 = arith.constant 0 : i32
    return %c0_i32, %c0_i32_0 : i32, i32
  }
  func.func @transform_15(%arg0: i32) -> (i32, i32) {
    %c0_i32 = arith.constant 0 : i32
    %c0_i32_0 = arith.constant 0 : i32
    return %arg0, %c0_i32 : i32, i32
  }
}

</mosaic_0001>

<llo_original>
// kernel: hnav_forward.1
$region0: #{hnav_forward.1}
  #allocation0 [shape = 'u32[]', space=smem, size = 0x4, offset = 0x4, fixed_abs, tag = 'smem constant byte address 0x4 - core index']
  #allocation1 [shape = 'u32[144,128]{1,0:T(1,128)}', space=vmem, size = 0x12000, scoped, tag = 'internal scratch']
  %s0 = inlined_call_operand.vmem [shape: f32[8,128], index: 0, kind: input, shape index: {}]
  %s1 = inlined_call_operand.vmem [shape: bf16[128,128], index: 1, kind: input, shape index: {}]
  %s2 = inlined_call_operand.vmem [shape: f32[1,128], index: 2, kind: input, shape index: {}]
  %s3 = inlined_call_operand.hbm [shape: bf16[128,128], index: 3, kind: input, shape index: {}]
  %s4 = inlined_call_operand.vmem [shape: f32[1,128], index: 4, kind: input, shape index: {}]
  %s5 = inlined_call_operand.hbm [shape: bf16[128,128], index: 5, kind: input, shape index: {}]
  %s6 = inlined_call_operand.vmem [shape: f32[1,128], index: 6, kind: input, shape index: {}]
  %s7 = inlined_call_operand.hbm [shape: bf16[128,128], index: 7, kind: input, shape index: {}]
  %s8 = inlined_call_operand.vmem [shape: f32[1,128], index: 8, kind: input, shape index: {}]
  %s9 = inlined_call_operand.hbm [shape: bf16[128,128], index: 9, kind: input, shape index: {}]
  %s10 = inlined_call_operand.vmem [shape: f32[1,128], index: 10, kind: input, shape index: {}]
  %s11 = inlined_call_operand.hbm [shape: bf16[128,128], index: 11, kind: input, shape index: {}]
  %s12 = inlined_call_operand.vmem [shape: f32[1,128], index: 12, kind: input, shape index: {}]
  %s13 = inlined_call_operand.hbm [shape: bf16[128,128], index: 13, kind: input, shape index: {}]
  %s14 = inlined_call_operand.vmem [shape: f32[1,128], index: 14, kind: input, shape index: {}]
  %s15 = inlined_call_operand.vmem [shape: f32[8,128], index: 15, kind: output, shape index: {}]
  %s16 = sld [smem:[#allocation0]]
  $region94: #{hnav_forward.1} parent=0
    _
  %s18 = ssub.s32 1, %s16
  %s19 = scalar_select 0, %s18, %s16
  $region1: #{hnav_forward.1} parent=0
    #allocation2 [shape = 'u8[32768]{0}', space=vmem, size = 0x8000, scoped, tag = 'input window, operand 3, single buffered']
    #allocation3 [shape = 's32[1]{0}', space=sflag, size = 0x4, scoped, tag = 'scoped memory for hnav_forward.1']
    #allocation4 [shape = 'u8[32768]{0}', space=vmem, size = 0x8000, scoped, tag = 'input window, operand 5, single buffered']
    #allocation5 [shape = 's32[1]{0}', space=sflag, size = 0x4, scoped, tag = 'scoped memory for hnav_forward.1']
    #allocation6 [shape = 'u8[32768]{0}', space=vmem, size = 0x8000, scoped, tag = 'input window, operand 7, single buffered']
    #allocation7 [shape = 'u8[32768]{0}', space=vmem, size = 0x8000, scoped, tag = 'input window, operand 9, single buffered']
    #allocation8 [shape = 's32[1]{0}', space=sflag, size = 0x4, scoped, tag = 'scoped memory for hnav_forward.1']
    #allocation9 [shape = 'u8[32768]{0}', space=vmem, size = 0x8000, scoped, tag = 'input window, operand 11, single buffered']
    #allocation10 [shape = 'u8[32768]{0}', space=vmem, size = 0x8000, scoped, tag = 'input window, operand 13, single buffered']
    #allocation11 [shape = 's32[1]{0}', space=sflag, size = 0x4, scoped, tag = 'scoped memory for hnav_forward.1']
    %20 = vsyncpa [#allocation3], 0
    %21 = vsyncpa [#allocation5], 0
    %22 = vsyncpa [#allocation8], 0
    %23 = vsyncpa [#allocation11], 0
    // Predicated region
    $region2: #{hnav_forward.1} parent=1 // pred_check
      _
    $region3: #{hnav_forward.1} parent=1 // pred_check_branch
      %25 = sbr.rel (0) target = $region5
    $region4: #{hnav_forward.1} parent=1 // pred_region
      _
    $region5: #{hnav_forward.1} parent=1 // pred_fallthru
      _
    // Predicated region
    $region6: #{hnav_forward.1} parent=1 // pred_check
      _
    $region7: #{hnav_forward.1} parent=1 // pred_check_branch
      %27 = sbr.rel (0) target = $region9
    $region8: #{hnav_forward.1} parent=1 // pred_region
      _
    $region9: #{hnav_forward.1} parent=1 // pred_fallthru
      _
    // Predicated region
    $region10: #{hnav_forward.1} parent=1 // pred_check
      _
    $region11: #{hnav_forward.1} parent=1 // pred_check_branch
      %29 = sbr.rel (0) target = $region13
    $region12: #{hnav_forward.1} parent=1 // pred_region
      _
    $region13: #{hnav_forward.1} parent=1 // pred_fallthru
      _
    // Predicated region
    $region14: #{hnav_forward.1} parent=1 // pred_check
      _
    $region15: #{hnav_forward.1} parent=1 // pred_check_branch
      %31 = sbr.rel (0) target = $region17
    $region16: #{hnav_forward.1} parent=1 // pred_region
      %s33 = ssub.s32 1024, 1024
      %34 = vsyncadd [#allocation3], %s33
      %s35 = sshll.u32 [#allocation2], 4
      %s36 = int_to_ptr.vmem [resolvable:$true] %s35
      %41 = dma.hbm_to_vmem [thread:$0]  %s3, 1024, %s36, [#allocation3], 64, 64, 4
    $region17: #{hnav_forward.1} parent=1 // pred_fallthru
      _
    // Predicated region
    $region18: #{hnav_forward.1} parent=1 // pred_check
      _
    $region19: #{hnav_forward.1} parent=1 // pred_check_branch
      %43 = sbr.rel (0) target = $region21
    $region20: #{hnav_forward.1} parent=1 // pred_region
      _
    $region21: #{hnav_forward.1} parent=1 // pred_fallthru
      _
    // Predicated region
    $region22: #{hnav_forward.1} parent=1 // pred_check
      _
    $region23: #{hnav_forward.1} parent=1 // pred_check_branch
      %45 = sbr.rel (0) target = $region25
    $region24: #{hnav_forward.1} parent=1 // pred_region
      %s47 = ssub.s32 1024, 1024
      %48 = vsyncadd [#allocation5], %s47
      %s49 = sshll.u32 [#allocation4], 4
      %s50 = int_to_ptr.vmem [resolvable:$true] %s49
      %55 = dma.hbm_to_vmem [thread:$0]  %s5, 1024, %s50, [#allocation5], 64, 64, 4
    $region25: #{hnav_forward.1} parent=1 // pred_fallthru
      _
    // Predicated region
    $region26: #{hnav_forward.1} parent=1 // pred_check
      _
    $region27: #{hnav_forward.1} parent=1 // pred_check_branch
      %57 = sbr.rel (0) target = $region29
    $region28: #{hnav_forward.1} parent=1 // pred_region
      _
    $region29: #{hnav_forward.1} parent=1 // pred_fallthru
      _
    // Predicated region
    $region30: #{hnav_forward.1} parent=1 // pred_check
      _
    $region31: #{hnav_forward.1} parent=1 // pred_check_branch
      %59 = sbr.rel (0) target = $region33
    $region32: #{hnav_forward.1} parent=1 // pred_region
      %s61 = ssub.s32 1024, 1024
      %62 = vsyncadd [#allocation5], %s61
      %s63 = sshll.u32 [#allocation6], 4
      %s64 = int_to_ptr.vmem [resolvable:$true] %s63
      %69 = dma.hbm_to_vmem [thread:$0]  %s7, 1024, %s64, [#allocation5], 64, 64, 4
    $region33: #{hnav_forward.1} parent=1 // pred_fallthru
      _
    // Predicated region
    $region34: #{hnav_forward.1} parent=1 // pred_check
      _
    $region35: #{hnav_forward.1} parent=1 // pred_check_branch
      %71 = sbr.rel (0) target = $region37
    $region36: #{hnav_forward.1} parent=1 // pred_region
      _
    $region37: #{hnav_forward.1} parent=1 // pred_fallthru
      _
    // Predicated region
    $region38: #{hnav_forward.1} parent=1 // pred_check
      _
    $region39: #{hnav_forward.1} parent=1 // pred_check_branch
      %73 = sbr.rel (0) target = $region41
    $region40: #{hnav_forward.1} parent=1 // pred_region
      %s75 = ssub.s32 1024, 1024
      %76 = vsyncadd [#allocation8], %s75
      %s77 = sshll.u32 [#allocation7], 4
      %s78 = int_to_ptr.vmem [resolvable:$true] %s77
      %83 = dma.hbm_to_vmem [thread:$0]  %s9, 1024, %s78, [#allocation8], 64, 64, 4
    $region41: #{hnav_forward.1} parent=1 // pred_fallthru
      _
    // Predicated region
    $region42: #{hnav_forward.1} parent=1 // pred_check
      _
    $region43: #{hnav_forward.1} parent=1 // pred_check_branch
      %85 = sbr.rel (0) target = $region45
    $region44: #{hnav_forward.1} parent=1 // pred_region
      _
    $region45: #{hnav_forward.1} parent=1 // pred_fallthru
      _
    // Predicated region
    $region46: #{hnav_forward.1} parent=1 // pred_check
      _
    $region47: #{hnav_forward.1} parent=1 // pred_check_branch
      %87 = sbr.rel (0) target = $region49
    $region48: #{hnav_forward.1} parent=1 // pred_region
      %s89 = ssub.s32 1024, 1024
      %90 = vsyncadd [#allocation8], %s89
      %s91 = sshll.u32 [#allocation9], 4
      %s92 = int_to_ptr.vmem [resolvable:$true] %s91
      %97 = dma.hbm_to_vmem [thread:$0]  %s11, 1024, %s92, [#allocation8], 64, 64, 4
    $region49: #{hnav_forward.1} parent=1 // pred_fallthru
      _
    // Predicated region
    $region50: #{hnav_forward.1} parent=1 // pred_check
      _
    $region51: #{hnav_forward.1} parent=1 // pred_check_branch
      %99 = sbr.rel (0) target = $region53
    $region52: #{hnav_forward.1} parent=1 // pred_region
      _
    $region53: #{hnav_forward.1} parent=1 // pred_fallthru
      _
    // Predicated region
    $region54: #{hnav_forward.1} parent=1 // pred_check
      _
    $region55: #{hnav_forward.1} parent=1 // pred_check_branch
      %101 = sbr.rel (0) target = $region57
    $region56: #{hnav_forward.1} parent=1 // pred_region
      %s103 = ssub.s32 1024, 1024
      %104 = vsyncadd [#allocation11], %s103
      %s105 = sshll.u32 [#allocation10], 4
      %s106 = int_to_ptr.vmem [resolvable:$true] %s105
      %111 = dma.hbm_to_vmem [thread:$0]  %s13, 1024, %s106, [#allocation11], 64, 64, 4
    $region57: #{hnav_forward.1} parent=1 // pred_fallthru
      _
    // Predicated region
    $region58: #{hnav_forward.1} parent=1 // pred_check
      _
    $region59: #{hnav_forward.1} parent=1 // pred_check_branch
      %113 = sbr.rel (0) target = $region61
    $region60: #{hnav_forward.1} parent=1 // pred_region
      _
    $region61: #{hnav_forward.1} parent=1 // pred_fallthru
      _
    // Predicated region
    $region62: #{hnav_forward.1} parent=1 // pred_check
      _
    $region63: #{hnav_forward.1} parent=1 // pred_check_branch
      %115 = sbr.rel (0) target = $region65
    $region64: #{hnav_forward.1} parent=1 // pred_region
      %116 = dma.done [#allocation3], 1024
    $region65: #{hnav_forward.1} parent=1 // pred_fallthru
      _
    // Predicated region
    $region66: #{hnav_forward.1} parent=1 // pred_check
      _
    $region67: #{hnav_forward.1} parent=1 // pred_check_branch
      %118 = sbr.rel (0) target = $region69
    $region68: #{hnav_forward.1} parent=1 // pred_region
      %119 = dma.done [#allocation5], 1024
    $region69: #{hnav_forward.1} parent=1 // pred_fallthru
      _
    // Predicated region
    $region70: #{hnav_forward.1} parent=1 // pred_check
      _
    $region71: #{hnav_forward.1} parent=1 // pred_check_branch
      %121 = sbr.rel (0) target = $region73
    $region72: #{hnav_forward.1} parent=1 // pred_region
      %122 = dma.done [#allocation5], 1024
    $region73: #{hnav_forward.1} parent=1 // pred_fallthru
      _
    // Predicated region
    $region74: #{hnav_forward.1} parent=1 // pred_check
      _
    $region75: #{hnav_forward.1} parent=1 // pred_check_branch
      %124 = sbr.rel (0) target = $region77
    $region76: #{hnav_forward.1} parent=1 // pred_region
      %125 = dma.done [#allocation8], 1024
    $region77: #{hnav_forward.1} parent=1 // pred_fallthru
      _
    // Predicated region
    $region78: #{hnav_forward.1} parent=1 // pred_check
      _
    $region79: #{hnav_forward.1} parent=1 // pred_check_branch
      %127 = sbr.rel (0) target = $region81
    $region80: #{hnav_forward.1} parent=1 // pred_region
      %128 = dma.done [#allocation8], 1024
    $region81: #{hnav_forward.1} parent=1 // pred_fallthru
      _
    // Predicated region
    $region82: #{hnav_forward.1} parent=1 // pred_check
      _
    $region83: #{hnav_forward.1} parent=1 // pred_check_branch
      %130 = sbr.rel (0) target = $region85
    $region84: #{hnav_forward.1} parent=1 // pred_region
      %131 = dma.done [#allocation11], 1024
    $region85: #{hnav_forward.1} parent=1 // pred_fallthru
      _
    %v133 = vld [vmem:[%s0] sm:$0xff]
    %v134 = vlaneseq
    %v135 = vand.u32 %v134, 127
    %vm136 = vcmp.ge.s32.totalorder %v135, 64
    %vm137 = vcmp.lt.s32.totalorder %v135, 80
    %vm138 = vmand %vm136, %vm137
    %vm139 = vcmp.ge.s32.totalorder %v135, 80
    %vm140 = vcmp.lt.s32.totalorder %v135, 96
    %vm141 = vmand %vm139, %vm140
    %v142 = vpack.c.bf16 %v133, %v133
    %v143 = vld [vmem:[%s1] sm:$0xf]
    %v144 = vld [vmem:[%s1 + $0x4] sm:$0xf]
    %v145 = vld [vmem:[%s1 + $0x8] sm:$0xf]
    %v146 = vld [vmem:[%s1 + $0xc] sm:$0xf]
    %v147 = vld [vmem:[%s1 + $0x10] sm:$0xf]
    %v148 = vld [vmem:[%s1 + $0x14] sm:$0xf]
    %v149 = vld [vmem:[%s1 + $0x18] sm:$0xf]
    %v150 = vld [vmem:[%s1 + $0x1c] sm:$0xf]
    %v151 = vld [vmem:[%s1 + $0x20] sm:$0xf]
    %v152 = vld [vmem:[%s1 + $0x24] sm:$0xf]
    %v153 = vld [vmem:[%s1 + $0x28] sm:$0xf]
    %v154 = vld [vmem:[%s1 + $0x2c] sm:$0xf]
    %v155 = vld [vmem:[%s1 + $0x30] sm:$0xf]
    %v156 = vld [vmem:[%s1 + $0x34] sm:$0xf]
    %v157 = vld [vmem:[%s1 + $0x38] sm:$0xf]
    %v158 = vld [vmem:[%s1 + $0x3c] sm:$0xf]
    %v159 = vld [vmem:[%s2] sm:$0x1]
    %v161 = vlaneseq
    %v162 = vshrl.u32 %v161, 7
    %v163 = vsub.s32 0, %v162
    %v164 = vrot.slane %v159, %v163
    %v182 = vunpack.c.l.b16 %v143
    %v183 = vunpack.c.l.b16 %v144
    %v184 = vunpack.c.l.b16 %v145
    %v185 = vunpack.c.l.b16 %v146
    %v186 = vunpack.c.l.b16 %v147
    %v187 = vunpack.c.l.b16 %v148
    %v188 = vunpack.c.l.b16 %v149
    %v189 = vunpack.c.l.b16 %v150
    %v190 = vunpack.c.l.b16 %v151
    %v191 = vunpack.c.l.b16 %v152
    %v192 = vunpack.c.l.b16 %v153
    %v193 = vunpack.c.l.b16 %v154
    %v194 = vunpack.c.l.b16 %v155
    %v195 = vunpack.c.l.b16 %v156
    %v196 = vunpack.c.l.b16 %v157
    %v197 = vunpack.c.l.b16 %v158
    %v198 = vpack.c.b16 %v183, %v182
    %v199 = vpack.c.b16 %v185, %v184
    %v200 = vpack.c.b16 %v187, %v186
    %v201 = vpack.c.b16 %v189, %v188
    %v202 = vpack.c.b16 %v191, %v190
    %v203 = vpack.c.b16 %v193, %v192
    %v204 = vpack.c.b16 %v195, %v194
    %v205 = vpack.c.b16 %v197, %v196
    %214 = vmatprep.subr.bf16.mxu0 0
    %215 = vmatpush1.bf16.msra.mxu0 %v198
    %216 = vmatprep.subr.bf16.mxu0 0
    %217 = vmatpush1.bf16.msra.mxu0 %v199
    %218 = vmatprep.subr.bf16.mxu0 0
    %219 = vmatpush1.bf16.msra.mxu0 %v200
    %220 = vmatprep.subr.bf16.mxu0 0
    %221 = vmatpush1.bf16.msra.mxu0 %v201
    %222 = vmatprep.subr.bf16.mxu0 0
    %223 = vmatpush1.bf16.msra.mxu0 %v202
    %224 = vmatprep.subr.bf16.mxu0 0
    %225 = vmatpush1.bf16.msra.mxu0 %v203
    %226 = vmatprep.subr.bf16.mxu0 0
    %227 = vmatpush1.bf16.msra.mxu0 %v204
    %228 = vmatprep.subr.bf16.mxu0 0
    %229 = vmatpush1.bf16.msra.mxu0 %v205
    %230 = vmatprep.subr.bf16.mxu0 0
    %231 = vmatpush1.bf16.msra.mxu0 0
    %232 = vmatprep.subr.bf16.mxu0 0
    %233 = vmatpush1.bf16.msra.mxu0 0
    %234 = vmatprep.subr.bf16.mxu0 0
    %235 = vmatpush1.bf16.msra.mxu0 0
    %236 = vmatprep.subr.bf16.mxu0 0
    %237 = vmatpush1.bf16.msra.mxu0 0
    %238 = vmatprep.subr.bf16.mxu0 0
    %239 = vmatpush1.bf16.msra.mxu0 0
    %240 = vmatprep.subr.bf16.mxu0 0
    %241 = vmatpush1.bf16.msra.mxu0 0
    %242 = vmatprep.subr.bf16.mxu0 0
    %243 = vmatpush1.bf16.msra.mxu0 0
    %244 = vmatprep.subr.bf16.mxu0 0
    %245 = vmatpush1.bf16.msra.mxu0 0
    %246 = vmatprep.mubr.bf16.mxu0 0
    %247 = vmatmul.mubr.bf16.gmra.mrb[0].mxu0 %v142
    %v248 = vpop.f32.mrb[0].mxu0
    %v249 = vadd.f32 %v164, %v248
    %v250 = vpop.f32.mrb[0].mxu0
    %v251 = vpop.f32.mrb[0].mxu0
    %v252 = vpop.f32.mrb[0].mxu0
    %253 = vdwg.mxu0
    %v254 = vmax.f32 %v249, 0.0
    %v255 = vpack.c.bf16 %v254, %v254
    %v256 = vld [vmem:[#allocation2] sm:$0xf]
    %v257 = vld [vmem:[#allocation2 + $0x4] sm:$0xf]
    %v258 = vld [vmem:[#allocation2 + $0x8] sm:$0xf]
    %v259 = vld [vmem:[#allocation2 + $0xc] sm:$0xf]
    %v260 = vld [vmem:[#allocation2 + $0x10] sm:$0xf]
    %v261 = vld [vmem:[#allocation2 + $0x14] sm:$0xf]
    %v262 = vld [vmem:[#allocation2 + $0x18] sm:$0xf]
    %v263 = vld [vmem:[#allocation2 + $0x1c] sm:$0xf]
    %v264 = vld [vmem:[#allocation2 + $0x20] sm:$0xf]
    %v265 = vld [vmem:[#allocation2 + $0x24] sm:$0xf]
    %v266 = vld [vmem:[#allocation2 + $0x28] sm:$0xf]
    %v267 = vld [vmem:[#allocation2 + $0x2c] sm:$0xf]
    %v268 = vld [vmem:[#allocation2 + $0x30] sm:$0xf]
    %v269 = vld [vmem:[#allocation2 + $0x34] sm:$0xf]
    %v270 = vld [vmem:[#allocation2 + $0x38] sm:$0xf]
    %v271 = vld [vmem:[#allocation2 + $0x3c] sm:$0xf]
    %v272 = vld [vmem:[%s4] sm:$0x1]
    %v274 = vlaneseq
    %v275 = vshrl.u32 %v274, 7
    %v276 = vsub.s32 0, %v275
    %v277 = vrot.slane %v272, %v276
    %v295 = vunpack.c.l.b16 %v256
    %v296 = vunpack.c.l.b16 %v257
    %v297 = vunpack.c.l.b16 %v258
    %v298 = vunpack.c.l.b16 %v259
    %v299 = vunpack.c.l.b16 %v260
    %v300 = vunpack.c.l.b16 %v261
    %v301 = vunpack.c.l.b16 %v262
    %v302 = vunpack.c.l.b16 %v263
    %v303 = vunpack.c.l.b16 %v264
    %v304 = vunpack.c.l.b16 %v265
    %v305 = vunpack.c.l.b16 %v266
    %v306 = vunpack.c.l.b16 %v267
    %v307 = vunpack.c.l.b16 %v268
    %v308 = vunpack.c.l.b16 %v269
    %v309 = vunpack.c.l.b16 %v270
    %v310 = vunpack.c.l.b16 %v271
    %v311 = vpack.c.b16 %v296, %v295
    %v312 = vpack.c.b16 %v298, %v297
    %v313 = vpack.c.b16 %v300, %v299
    %v314 = vpack.c.b16 %v302, %v301
    %v315 = vpack.c.b16 %v304, %v303
    %v316 = vpack.c.b16 %v306, %v305
    %v317 = vpack.c.b16 %v308, %v307
    %v318 = vpack.c.b16 %v310, %v309
    %327 = vmatprep.subr.bf16.mxu0 0
    %328 = vmatpush1.bf16.msra.mxu0 %v311
    %329 = vmatprep.subr.bf16.mxu0 0
    %330 = vmatpush1.bf16.msra.mxu0 %v312
    %331 = vmatprep.subr.bf16.mxu0 0
    %332 = vmatpush1.bf16.msra.mxu0 %v313
    %333 = vmatprep.subr.bf16.mxu0 0
    %334 = vmatpush1.bf16.msra.mxu0 %v314
    %335 = vmatprep.subr.bf16.mxu0 0
    %336 = vmatpush1.bf16.msra.mxu0 %v315
    %337 = vmatprep.subr.bf16.mxu0 0
    %338 = vmatpush1.bf16.msra.mxu0 %v316
    %339 = vmatprep.subr.bf16.mxu0 0
    %340 = vmatpush1.bf16.msra.mxu0 %v317
    %341 = vmatprep.subr.bf16.mxu0 0
    %342 = vmatpush1.bf16.msra.mxu0 %v318
    %343 = vmatprep.subr.bf16.mxu0 0
    %344 = vmatpush1.bf16.msra.mxu0 0
    %345 = vmatprep.subr.bf16.mxu0 0
    %346 = vmatpush1.bf16.msra.mxu0 0
    %347 = vmatprep.subr.bf16.mxu0 0
    %348 = vmatpush1.bf16.msra.mxu0 0
    %349 = vmatprep.subr.bf16.mxu0 0
    %350 = vmatpush1.bf16.msra.mxu0 0
    %351 = vmatprep.subr.bf16.mxu0 0
    %352 = vmatpush1.bf16.msra.mxu0 0
    %353 = vmatprep.subr.bf16.mxu0 0
    %354 = vmatpush1.bf16.msra.mxu0 0
    %355 = vmatprep.subr.bf16.mxu0 0
    %356 = vmatpush1.bf16.msra.mxu0 0
    %357 = vmatprep.subr.bf16.mxu0 0
    %358 = vmatpush1.bf16.msra.mxu0 0
    %359 = vmatprep.mubr.bf16.mxu0 0
    %360 = vmatmul.mubr.bf16.gmra.mrb[0].mxu0 %v255
    %v361 = vpop.f32.mrb[0].mxu0
    %v362 = vadd.f32 %v277, %v361
    %v363 = vpop.f32.mrb[0].mxu0
    %v364 = vpop.f32.mrb[0].mxu0
    %v365 = vpop.f32.mrb[0].mxu0
    %366 = vdwg.mxu0
    %v367 = vmax.f32 %v362, 0.0
    %v368 = vpack.c.bf16 %v367, %v367
    %v369 = vld [vmem:[#allocation4] sm:$0xf]
    %v370 = vld [vmem:[#allocation4 + $0x4] sm:$0xf]
    %v371 = vld [vmem:[#allocation4 + $0x8] sm:$0xf]
    %v372 = vld [vmem:[#allocation4 + $0xc] sm:$0xf]
    %v373 = vld [vmem:[#allocation4 + $0x10] sm:$0xf]
    %v374 = vld [vmem:[#allocation4 + $0x14] sm:$0xf]
    %v375 = vld [vmem:[#allocation4 + $0x18] sm:$0xf]
    %v376 = vld [vmem:[#allocation4 + $0x1c] sm:$0xf]
    %v377 = vld [vmem:[#allocation4 + $0x20] sm:$0xf]
    %v378 = vld [vmem:[#allocation4 + $0x24] sm:$0xf]
    %v379 = vld [vmem:[#allocation4 + $0x28] sm:$0xf]
    %v380 = vld [vmem:[#allocation4 + $0x2c] sm:$0xf]
    %v381 = vld [vmem:[#allocation4 + $0x30] sm:$0xf]
    %v382 = vld [vmem:[#allocation4 + $0x34] sm:$0xf]
    %v383 = vld [vmem:[#allocation4 + $0x38] sm:$0xf]
    %v384 = vld [vmem:[#allocation4 + $0x3c] sm:$0xf]
    %v385 = vld [vmem:[%s6] sm:$0x1]
    %v387 = vlaneseq
    %v388 = vshrl.u32 %v387, 7
    %v389 = vsub.s32 0, %v388
    %v390 = vrot.slane %v385, %v389
    %v408 = vunpack.c.l.b16 %v369
    %v409 = vunpack.c.l.b16 %v370
    %v410 = vunpack.c.l.b16 %v371
    %v411 = vunpack.c.l.b16 %v372
    %v412 = vunpack.c.l.b16 %v373
    %v413 = vunpack.c.l.b16 %v374
    %v414 = vunpack.c.l.b16 %v375
    %v415 = vunpack.c.l.b16 %v376
    %v416 = vunpack.c.l.b16 %v377
    %v417 = vunpack.c.l.b16 %v378
    %v418 = vunpack.c.l.b16 %v379
    %v419 = vunpack.c.l.b16 %v380
    %v420 = vunpack.c.l.b16 %v381
    %v421 = vunpack.c.l.b16 %v382
    %v422 = vunpack.c.l.b16 %v383
    %v423 = vunpack.c.l.b16 %v384
    %v424 = vpack.c.b16 %v409, %v408
    %v425 = vpack.c.b16 %v411, %v410
    %v426 = vpack.c.b16 %v413, %v412
    %v427 = vpack.c.b16 %v415, %v414
    %v428 = vpack.c.b16 %v417, %v416
    %v429 = vpack.c.b16 %v419, %v418
    %v430 = vpack.c.b16 %v421, %v420
    %v431 = vpack.c.b16 %v423, %v422
    %440 = vmatprep.subr.bf16.mxu0 0
    %441 = vmatpush1.bf16.msra.mxu0 %v424
    %442 = vmatprep.subr.bf16.mxu0 0
    %443 = vmatpush1.bf16.msra.mxu0 %v425
    %444 = vmatprep.subr.bf16.mxu0 0
    %445 = vmatpush1.bf16.msra.mxu0 %v426
    %446 = vmatprep.subr.bf16.mxu0 0
    %447 = vmatpush1.bf16.msra.mxu0 %v427
    %448 = vmatprep.subr.bf16.mxu0 0
    %449 = vmatpush1.bf16.msra.mxu0 %v428
    %450 = vmatprep.subr.bf16.mxu0 0
    %451 = vmatpush1.bf16.msra.mxu0 %v429
    %452 = vmatprep.subr.bf16.mxu0 0
    %453 = vmatpush1.bf16.msra.mxu0 %v430
    %454 = vmatprep.subr.bf16.mxu0 0
    %455 = vmatpush1.bf16.msra.mxu0 %v431
    %456 = vmatprep.subr.bf16.mxu0 0
    %457 = vmatpush1.bf16.msra.mxu0 0
    %458 = vmatprep.subr.bf16.mxu0 0
    %459 = vmatpush1.bf16.msra.mxu0 0
    %460 = vmatprep.subr.bf16.mxu0 0
    %461 = vmatpush1.bf16.msra.mxu0 0
    %462 = vmatprep.subr.bf16.mxu0 0
    %463 = vmatpush1.bf16.msra.mxu0 0
    %464 = vmatprep.subr.bf16.mxu0 0
    %465 = vmatpush1.bf16.msra.mxu0 0
    %466 = vmatprep.subr.bf16.mxu0 0
    %467 = vmatpush1.bf16.msra.mxu0 0
    %468 = vmatprep.subr.bf16.mxu0 0
    %469 = vmatpush1.bf16.msra.mxu0 0
    %470 = vmatprep.subr.bf16.mxu0 0
    %471 = vmatpush1.bf16.msra.mxu0 0
    %472 = vmatprep.mubr.bf16.mxu0 0
    %473 = vmatmul.mubr.bf16.gmra.mrb[0].mxu0 %v368
    %v474 = vpop.f32.mrb[0].mxu0
    %v475 = vadd.f32 %v390, %v474
    %v476 = vpop.f32.mrb[0].mxu0
    %v477 = vpop.f32.mrb[0].mxu0
    %v478 = vpop.f32.mrb[0].mxu0
    %479 = vdwg.mxu0
    %v480 = vmax.f32 %v475, 0.0
    %v481 = vpack.c.bf16 %v480, %v480
    %v482 = vsel %vm138, %v133, 0.0
    %v483 = vpack.c.bf16 %v482, %v482
    %v484 = vadd.bf16 %v481, %v483
    %v485 = vld [vmem:[#allocation6] sm:$0xf]
    %v486 = vld [vmem:[#allocation6 + $0x4] sm:$0xf]
    %v487 = vld [vmem:[#allocation6 + $0x8] sm:$0xf]
    %v488 = vld [vmem:[#allocation6 + $0xc] sm:$0xf]
    %v489 = vld [vmem:[#allocation6 + $0x10] sm:$0xf]
    %v490 = vld [vmem:[#allocation6 + $0x14] sm:$0xf]
    %v491 = vld [vmem:[#allocation6 + $0x18] sm:$0xf]
    %v492 = vld [vmem:[#allocation6 + $0x1c] sm:$0xf]
    %v493 = vld [vmem:[#allocation6 + $0x20] sm:$0xf]
    %v494 = vld [vmem:[#allocation6 + $0x24] sm:$0xf]
    %v495 = vld [vmem:[#allocation6 + $0x28] sm:$0xf]
    %v496 = vld [vmem:[#allocation6 + $0x2c] sm:$0xf]
    %v497 = vld [vmem:[#allocation6 + $0x30] sm:$0xf]
    %v498 = vld [vmem:[#allocation6 + $0x34] sm:$0xf]
    %v499 = vld [vmem:[#allocation6 + $0x38] sm:$0xf]
    %v500 = vld [vmem:[#allocation6 + $0x3c] sm:$0xf]
    %v501 = vld [vmem:[%s8] sm:$0x1]
    %v503 = vlaneseq
    %v504 = vshrl.u32 %v503, 7
    %v505 = vsub.s32 0, %v504
    %v506 = vrot.slane %v501, %v505
    %v524 = vunpack.c.l.b16 %v485
    %v525 = vunpack.c.l.b16 %v486
    %v526 = vunpack.c.l.b16 %v487
    %v527 = vunpack.c.l.b16 %v488
    %v528 = vunpack.c.l.b16 %v489
    %v529 = vunpack.c.l.b16 %v490
    %v530 = vunpack.c.l.b16 %v491
    %v531 = vunpack.c.l.b16 %v492
    %v532 = vunpack.c.l.b16 %v493
    %v533 = vunpack.c.l.b16 %v494
    %v534 = vunpack.c.l.b16 %v495
    %v535 = vunpack.c.l.b16 %v496
    %v536 = vunpack.c.l.b16 %v497
    %v537 = vunpack.c.l.b16 %v498
    %v538 = vunpack.c.l.b16 %v499
    %v539 = vunpack.c.l.b16 %v500
    %v540 = vpack.c.b16 %v525, %v524
    %v541 = vpack.c.b16 %v527, %v526
    %v542 = vpack.c.b16 %v529, %v528
    %v543 = vpack.c.b16 %v531, %v530
    %v544 = vpack.c.b16 %v533, %v532
    %v545 = vpack.c.b16 %v535, %v534
    %v546 = vpack.c.b16 %v537, %v536
    %v547 = vpack.c.b16 %v539, %v538
    %556 = vmatprep.subr.bf16.mxu0 0
    %557 = vmatpush1.bf16.msra.mxu0 %v540
    %558 = vmatprep.subr.bf16.mxu0 0
    %559 = vmatpush1.bf16.msra.mxu0 %v541
    %560 = vmatprep.subr.bf16.mxu0 0
    %561 = vmatpush1.bf16.msra.mxu0 %v542
    %562 = vmatprep.subr.bf16.mxu0 0
    %563 = vmatpush1.bf16.msra.mxu0 %v543
    %564 = vmatprep.subr.bf16.mxu0 0
    %565 = vmatpush1.bf16.msra.mxu0 %v544
    %566 = vmatprep.subr.bf16.mxu0 0
    %567 = vmatpush1.bf16.msra.mxu0 %v545
    %568 = vmatprep.subr.bf16.mxu0 0
    %569 = vmatpush1.bf16.msra.mxu0 %v546
    %570 = vmatprep.subr.bf16.mxu0 0
    %571 = vmatpush1.bf16.msra.mxu0 %v547
    %572 = vmatprep.subr.bf16.mxu0 0
    %573 = vmatpush1.bf16.msra.mxu0 0
    %574 = vmatprep.subr.bf16.mxu0 0
    %575 = vmatpush1.bf16.msra.mxu0 0
    %576 = vmatprep.subr.bf16.mxu0 0
    %577 = vmatpush1.bf16.msra.mxu0 0
    %578 = vmatprep.subr.bf16.mxu0 0
    %579 = vmatpush1.bf16.msra.mxu0 0
    %580 = vmatprep.subr.bf16.mxu0 0
    %581 = vmatpush1.bf16.msra.mxu0 0
    %582 = vmatprep.subr.bf16.mxu0 0
    %583 = vmatpush1.bf16.msra.mxu0 0
    %584 = vmatprep.subr.bf16.mxu0 0
    %585 = vmatpush1.bf16.msra.mxu0 0
    %586 = vmatprep.subr.bf16.mxu0 0
    %587 = vmatpush1.bf16.msra.mxu0 0
    %588 = vmatprep.mubr.bf16.mxu0 0
    %589 = vmatmul.mubr.bf16.gmra.mrb[0].mxu0 %v484
    %v590 = vpop.f32.mrb[0].mxu0
    %v591 = vadd.f32 %v506, %v590
    %v592 = vpop.f32.mrb[0].mxu0
    %v593 = vpop.f32.mrb[0].mxu0
    %v594 = vpop.f32.mrb[0].mxu0
    %595 = vdwg.mxu0
    %v596 = vmax.f32 %v591, 0.0
    %v597 = vpack.c.bf16 %v596, %v596
    %v598 = vld [vmem:[#allocation7] sm:$0xf]
    %v599 = vld [vmem:[#allocation7 + $0x4] sm:$0xf]
    %v600 = vld [vmem:[#allocation7 + $0x8] sm:$0xf]
    %v601 = vld [vmem:[#allocation7 + $0xc] sm:$0xf]
    %v602 = vld [vmem:[#allocation7 + $0x10] sm:$0xf]
    %v603 = vld [vmem:[#allocation7 + $0x14] sm:$0xf]
    %v604 = vld [vmem:[#allocation7 + $0x18] sm:$0xf]
    %v605 = vld [vmem:[#allocation7 + $0x1c] sm:$0xf]
    %v606 = vld [vmem:[#allocation7 + $0x20] sm:$0xf]
    %v607 = vld [vmem:[#allocation7 + $0x24] sm:$0xf]
    %v608 = vld [vmem:[#allocation7 + $0x28] sm:$0xf]
    %v609 = vld [vmem:[#allocation7 + $0x2c] sm:$0xf]
    %v610 = vld [vmem:[#allocation7 + $0x30] sm:$0xf]
    %v611 = vld [vmem:[#allocation7 + $0x34] sm:$0xf]
    %v612 = vld [vmem:[#allocation7 + $0x38] sm:$0xf]
    %v613 = vld [vmem:[#allocation7 + $0x3c] sm:$0xf]
    %v614 = vld [vmem:[%s10] sm:$0x1]
    %v616 = vlaneseq
    %v617 = vshrl.u32 %v616, 7
    %v618 = vsub.s32 0, %v617
    %v619 = vrot.slane %v614, %v618
    %v637 = vunpack.c.l.b16 %v598
    %v638 = vunpack.c.l.b16 %v599
    %v639 = vunpack.c.l.b16 %v600
    %v640 = vunpack.c.l.b16 %v601
    %v641 = vunpack.c.l.b16 %v602
    %v642 = vunpack.c.l.b16 %v603
    %v643 = vunpack.c.l.b16 %v604
    %v644 = vunpack.c.l.b16 %v605
    %v645 = vunpack.c.l.b16 %v606
    %v646 = vunpack.c.l.b16 %v607
    %v647 = vunpack.c.l.b16 %v608
    %v648 = vunpack.c.l.b16 %v609
    %v649 = vunpack.c.l.b16 %v610
    %v650 = vunpack.c.l.b16 %v611
    %v651 = vunpack.c.l.b16 %v612
    %v652 = vunpack.c.l.b16 %v613
    %v653 = vpack.c.b16 %v638, %v637
    %v654 = vpack.c.b16 %v640, %v639
    %v655 = vpack.c.b16 %v642, %v641
    %v656 = vpack.c.b16 %v644, %v643
    %v657 = vpack.c.b16 %v646, %v645
    %v658 = vpack.c.b16 %v648, %v647
    %v659 = vpack.c.b16 %v650, %v649
    %v660 = vpack.c.b16 %v652, %v651
    %669 = vmatprep.subr.bf16.mxu0 0
    %670 = vmatpush1.bf16.msra.mxu0 %v653
    %671 = vmatprep.subr.bf16.mxu0 0
    %672 = vmatpush1.bf16.msra.mxu0 %v654
    %673 = vmatprep.subr.bf16.mxu0 0
    %674 = vmatpush1.bf16.msra.mxu0 %v655
    %675 = vmatprep.subr.bf16.mxu0 0
    %676 = vmatpush1.bf16.msra.mxu0 %v656
    %677 = vmatprep.subr.bf16.mxu0 0
    %678 = vmatpush1.bf16.msra.mxu0 %v657
    %679 = vmatprep.subr.bf16.mxu0 0
    %680 = vmatpush1.bf16.msra.mxu0 %v658
    %681 = vmatprep.subr.bf16.mxu0 0
    %682 = vmatpush1.bf16.msra.mxu0 %v659
    %683 = vmatprep.subr.bf16.mxu0 0
    %684 = vmatpush1.bf16.msra.mxu0 %v660
    %685 = vmatprep.subr.bf16.mxu0 0
    %686 = vmatpush1.bf16.msra.mxu0 0
    %687 = vmatprep.subr.bf16.mxu0 0
    %688 = vmatpush1.bf16.msra.mxu0 0
    %689 = vmatprep.subr.bf16.mxu0 0
    %690 = vmatpush1.bf16.msra.mxu0 0
    %691 = vmatprep.subr.bf16.mxu0 0
    %692 = vmatpush1.bf16.msra.mxu0 0
    %693 = vmatprep.subr.bf16.mxu0 0
    %694 = vmatpush1.bf16.msra.mxu0 0
    %695 = vmatprep.subr.bf16.mxu0 0
    %696 = vmatpush1.bf16.msra.mxu0 0
    %697 = vmatprep.subr.bf16.mxu0 0
    %698 = vmatpush1.bf16.msra.mxu0 0
    %699 = vmatprep.subr.bf16.mxu0 0
    %700 = vmatpush1.bf16.msra.mxu0 0
    %701 = vmatprep.mubr.bf16.mxu0 0
    %702 = vmatmul.mubr.bf16.gmra.mrb[0].mxu0 %v597
    %v703 = vpop.f32.mrb[0].mxu0
    %v704 = vadd.f32 %v619, %v703
    %v705 = vpop.f32.mrb[0].mxu0
    %v706 = vpop.f32.mrb[0].mxu0
    %v707 = vpop.f32.mrb[0].mxu0
    %708 = vdwg.mxu0
    %v709 = vmul.f32 %v704, 0.5
    %v710 = vmul.f32 %v709, 1.442695
    %v711 = vpow.pop %v710
    %v712 = vmul.f32 %v711, %v133
    %v713 = vsel %vm138, %v704, 0.0
    %v714 = vpack.c.bf16 %v713, %v713
    %v715 = vadd.bf16 %v481, %v714
    %v716 = vsel %vm141, %v712, 0.0
    %v717 = vpack.c.bf16 %v716, %v716
    %v718 = vadd.bf16 %v715, %v717
    %v719 = vld [vmem:[#allocation9] sm:$0xf]
    %v720 = vld [vmem:[#allocation9 + $0x4] sm:$0xf]
    %v721 = vld [vmem:[#allocation9 + $0x8] sm:$0xf]
    %v722 = vld [vmem:[#allocation9 + $0xc] sm:$0xf]
    %v723 = vld [vmem:[#allocation9 + $0x10] sm:$0xf]
    %v724 = vld [vmem:[#allocation9 + $0x14] sm:$0xf]
    %v725 = vld [vmem:[#allocation9 + $0x18] sm:$0xf]
    %v726 = vld [vmem:[#allocation9 + $0x1c] sm:$0xf]
    %v727 = vld [vmem:[#allocation9 + $0x20] sm:$0xf]
    %v728 = vld [vmem:[#allocation9 + $0x24] sm:$0xf]
    %v729 = vld [vmem:[#allocation9 + $0x28] sm:$0xf]
    %v730 = vld [vmem:[#allocation9 + $0x2c] sm:$0xf]
    %v731 = vld [vmem:[#allocation9 + $0x30] sm:$0xf]
    %v732 = vld [vmem:[#allocation9 + $0x34] sm:$0xf]
    %v733 = vld [vmem:[#allocation9 + $0x38] sm:$0xf]
    %v734 = vld [vmem:[#allocation9 + $0x3c] sm:$0xf]
    %v735 = vld [vmem:[%s12] sm:$0x1]
    %v737 = vlaneseq
    %v738 = vshrl.u32 %v737, 7
    %v739 = vsub.s32 0, %v738
    %v740 = vrot.slane %v735, %v739
    %v758 = vunpack.c.l.b16 %v719
    %v759 = vunpack.c.l.b16 %v720
    %v760 = vunpack.c.l.b16 %v721
    %v761 = vunpack.c.l.b16 %v722
    %v762 = vunpack.c.l.b16 %v723
    %v763 = vunpack.c.l.b16 %v724
    %v764 = vunpack.c.l.b16 %v725
    %v765 = vunpack.c.l.b16 %v726
    %v766 = vunpack.c.l.b16 %v727
    %v767 = vunpack.c.l.b16 %v728
    %v768 = vunpack.c.l.b16 %v729
    %v769 = vunpack.c.l.b16 %v730
    %v770 = vunpack.c.l.b16 %v731
    %v771 = vunpack.c.l.b16 %v732
    %v772 = vunpack.c.l.b16 %v733
    %v773 = vunpack.c.l.b16 %v734
    %v774 = vpack.c.b16 %v759, %v758
    %v775 = vpack.c.b16 %v761, %v760
    %v776 = vpack.c.b16 %v763, %v762
    %v777 = vpack.c.b16 %v765, %v764
    %v778 = vpack.c.b16 %v767, %v766
    %v779 = vpack.c.b16 %v769, %v768
    %v780 = vpack.c.b16 %v771, %v770
    %v781 = vpack.c.b16 %v773, %v772
    %790 = vmatprep.subr.bf16.mxu0 0
    %791 = vmatpush1.bf16.msra.mxu0 %v774
    %792 = vmatprep.subr.bf16.mxu0 0
    %793 = vmatpush1.bf16.msra.mxu0 %v775
    %794 = vmatprep.subr.bf16.mxu0 0
    %795 = vmatpush1.bf16.msra.mxu0 %v776
    %796 = vmatprep.subr.bf16.mxu0 0
    %797 = vmatpush1.bf16.msra.mxu0 %v777
    %798 = vmatprep.subr.bf16.mxu0 0
    %799 = vmatpush1.bf16.msra.mxu0 %v778
    %800 = vmatprep.subr.bf16.mxu0 0
    %801 = vmatpush1.bf16.msra.mxu0 %v779
    %802 = vmatprep.subr.bf16.mxu0 0
    %803 = vmatpush1.bf16.msra.mxu0 %v780
    %804 = vmatprep.subr.bf16.mxu0 0
    %805 = vmatpush1.bf16.msra.mxu0 %v781
    %806 = vmatprep.subr.bf16.mxu0 0
    %807 = vmatpush1.bf16.msra.mxu0 0
    %808 = vmatprep.subr.bf16.mxu0 0
    %809 = vmatpush1.bf16.msra.mxu0 0
    %810 = vmatprep.subr.bf16.mxu0 0
    %811 = vmatpush1.bf16.msra.mxu0 0
    %812 = vmatprep.subr.bf16.mxu0 0
    %813 = vmatpush1.bf16.msra.mxu0 0
    %814 = vmatprep.subr.bf16.mxu0 0
    %815 = vmatpush1.bf16.msra.mxu0 0
    %816 = vmatprep.subr.bf16.mxu0 0
    %817 = vmatpush1.bf16.msra.mxu0 0
    %818 = vmatprep.subr.bf16.mxu0 0
    %819 = vmatpush1.bf16.msra.mxu0 0
    %820 = vmatprep.subr.bf16.mxu0 0
    %821 = vmatpush1.bf16.msra.mxu0 0
    %822 = vmatprep.mubr.bf16.mxu0 0
    %823 = vmatmul.mubr.bf16.gmra.mrb[0].mxu0 %v718
    %v824 = vpop.f32.mrb[0].mxu0
    %v825 = vadd.f32 %v740, %v824
    %v826 = vpop.f32.mrb[0].mxu0
    %v827 = vpop.f32.mrb[0].mxu0
    %v828 = vpop.f32.mrb[0].mxu0
    %829 = vdwg.mxu0
    %v830 = vmax.f32 %v825, 0.0
    %v831 = vpack.c.bf16 %v830, %v830
    %v832 = vld [vmem:[#allocation10] sm:$0xf]
    %v833 = vld [vmem:[#allocation10 + $0x4] sm:$0xf]
    %v834 = vld [vmem:[#allocation10 + $0x8] sm:$0xf]
    %v835 = vld [vmem:[#allocation10 + $0xc] sm:$0xf]
    %v836 = vld [vmem:[#allocation10 + $0x10] sm:$0xf]
    %v837 = vld [vmem:[#allocation10 + $0x14] sm:$0xf]
    %v838 = vld [vmem:[#allocation10 + $0x18] sm:$0xf]
    %v839 = vld [vmem:[#allocation10 + $0x1c] sm:$0xf]
    %v840 = vld [vmem:[#allocation10 + $0x20] sm:$0xf]
    %v841 = vld [vmem:[#allocation10 + $0x24] sm:$0xf]
    %v842 = vld [vmem:[#allocation10 + $0x28] sm:$0xf]
    %v843 = vld [vmem:[#allocation10 + $0x2c] sm:$0xf]
    %v844 = vld [vmem:[#allocation10 + $0x30] sm:$0xf]
    %v845 = vld [vmem:[#allocation10 + $0x34] sm:$0xf]
    %v846 = vld [vmem:[#allocation10 + $0x38] sm:$0xf]
    %v847 = vld [vmem:[#allocation10 + $0x3c] sm:$0xf]
    %v848 = vld [vmem:[%s14] sm:$0x1]
    %v850 = vlaneseq
    %v851 = vshrl.u32 %v850, 7
    %v852 = vsub.s32 0, %v851
    %v853 = vrot.slane %v848, %v852
    %v871 = vunpack.c.l.b16 %v832
    %v872 = vunpack.c.l.b16 %v833
    %v873 = vunpack.c.l.b16 %v834
    %v874 = vunpack.c.l.b16 %v835
    %v875 = vunpack.c.l.b16 %v836
    %v876 = vunpack.c.l.b16 %v837
    %v877 = vunpack.c.l.b16 %v838
    %v878 = vunpack.c.l.b16 %v839
    %v879 = vunpack.c.l.b16 %v840
    %v880 = vunpack.c.l.b16 %v841
    %v881 = vunpack.c.l.b16 %v842
    %v882 = vunpack.c.l.b16 %v843
    %v883 = vunpack.c.l.b16 %v844
    %v884 = vunpack.c.l.b16 %v845
    %v885 = vunpack.c.l.b16 %v846
    %v886 = vunpack.c.l.b16 %v847
    %v887 = vpack.c.b16 %v872, %v871
    %v888 = vpack.c.b16 %v874, %v873
    %v889 = vpack.c.b16 %v876, %v875
    %v890 = vpack.c.b16 %v878, %v877
    %v891 = vpack.c.b16 %v880, %v879
    %v892 = vpack.c.b16 %v882, %v881
    %v893 = vpack.c.b16 %v884, %v883
    %v894 = vpack.c.b16 %v886, %v885
    %903 = vmatprep.subr.bf16.mxu0 0
    %904 = vmatpush1.bf16.msra.mxu0 %v887
    %905 = vmatprep.subr.bf16.mxu0 0
    %906 = vmatpush1.bf16.msra.mxu0 %v888
    %907 = vmatprep.subr.bf16.mxu0 0
    %908 = vmatpush1.bf16.msra.mxu0 %v889
    %909 = vmatprep.subr.bf16.mxu0 0
    %910 = vmatpush1.bf16.msra.mxu0 %v890
    %911 = vmatprep.subr.bf16.mxu0 0
    %912 = vmatpush1.bf16.msra.mxu0 %v891
    %913 = vmatprep.subr.bf16.mxu0 0
    %914 = vmatpush1.bf16.msra.mxu0 %v892
    %915 = vmatprep.subr.bf16.mxu0 0
    %916 = vmatpush1.bf16.msra.mxu0 %v893
    %917 = vmatprep.subr.bf16.mxu0 0
    %918 = vmatpush1.bf16.msra.mxu0 %v894
    %919 = vmatprep.subr.bf16.mxu0 0
    %920 = vmatpush1.bf16.msra.mxu0 0
    %921 = vmatprep.subr.bf16.mxu0 0
    %922 = vmatpush1.bf16.msra.mxu0 0
    %923 = vmatprep.subr.bf16.mxu0 0
    %924 = vmatpush1.bf16.msra.mxu0 0
    %925 = vmatprep.subr.bf16.mxu0 0
    %926 = vmatpush1.bf16.msra.mxu0 0
    %927 = vmatprep.subr.bf16.mxu0 0
    %928 = vmatpush1.bf16.msra.mxu0 0
    %929 = vmatprep.subr.bf16.mxu0 0
    %930 = vmatpush1.bf16.msra.mxu0 0
    %931 = vmatprep.subr.bf16.mxu0 0
    %932 = vmatpush1.bf16.msra.mxu0 0
    %933 = vmatprep.subr.bf16.mxu0 0
    %934 = vmatpush1.bf16.msra.mxu0 0
    %935 = vmatprep.mubr.bf16.mxu0 0
    %936 = vmatmul.mubr.bf16.gmra.mrb[0].mxu0 %v831
    %v937 = vpop.f32.mrb[0].mxu0
    %v938 = vadd.f32 %v853, %v937
    %v939 = vpop.f32.mrb[0].mxu0
    %v940 = vpop.f32.mrb[0].mxu0
    %v941 = vpop.f32.mrb[0].mxu0
    %942 = vdwg.mxu0
    %v943 = vadd.f32 %v480, %v704
    %v944 = vadd.f32 %v943, %v938
    %945 = vst [vmem:[%s15] sm:$0xff] %v944
    // Predicated region
    $region86: #{hnav_forward.1} parent=1 // pred_check
      _
    $region87: #{hnav_forward.1} parent=1 // pred_check_branch
      %947 = sbr.rel (0) target = $region89
    $region88: #{hnav_forward.1} parent=1 // pred_region
      _
    $region89: #{hnav_forward.1} parent=1 // pred_fallthru
      _
    // Predicated region
    $region90: #{hnav_forward.1} parent=1 // pred_check
      _
    $region91: #{hnav_forward.1} parent=1 // pred_check_branch
      %949 = sbr.rel (0) target = $region93
    $region92: #{hnav_forward.1} parent=1 // pred_region
      _
    $region93: #{hnav_forward.1} parent=1 // pred_fallthru
      _
    %950 = vsyncpa [#allocation3], 1
    %951 = vsyncpa [#allocation5], 1
    %952 = vsyncpa [#allocation8], 1
    %953 = vsyncpa [#allocation11], 1

</llo_original>
